<compile_context>
chip_gen: v5e
topology: v5e:2x2
jax: 0.10.0
libtpu: 0.0.40
codegen_flags: <defaults>
</compile_context>

<pallas_src>
import functools

import jax
import jax.numpy as jnp
from jax.experimental import pallas as pl
from jax.experimental.pallas import tpu as pltpu

LANES = 128


def _round_up(x, m):
    return (x + m - 1) // m * m


def _sage_layer_kernel(a_ref, xf_ref, xt_ref, w_ref, b_ref, o_ref):
    """Fused SAGE layer for one destination-row tile.

    a_ref : [tm, Np]        bf16 row-normalized adjacency tile (mean agg)
    xf_ref: [Np, Fin]       bf16 full node features (resident across grid)
    xt_ref: [tm, Fin]       bf16 features of this tile's rows (root path)
    w_ref : [2*Fin, Fpad]   bf16 vstack([Wl, Wr]), Fout zero-padded to Fpad
    b_ref : [1, Fpad]       f32 bias (zero-padded)
    o_ref : [tm, Fpad]      relu((A@X)@Wl + X@Wr + b)
    """
    # Aggregation on the MXU, f32 accumulation.
    agg = jnp.dot(a_ref[...], xf_ref[...], preferred_element_type=jnp.float32)
    # Single fused transform: [agg | x_tile] @ [Wl; Wr]  (K = 2*Fin).
    lhs = jnp.concatenate([agg.astype(jnp.bfloat16), xt_ref[...]], axis=-1)
    h = jnp.dot(lhs, w_ref[...], preferred_element_type=jnp.float32)
    h = h + b_ref[...]                      # f32 epilogue
    o_ref[...] = jnp.maximum(h, 0.0).astype(o_ref.dtype)


def sage_layer(adj, x, w_stack, bias, *, tm, out_dtype):
    """One SAGEConv layer, row-tiled over destination nodes."""
    np_, fin = x.shape
    fout = w_stack.shape[1]
    grid = (np_ // tm,)
    return pl.pallas_call(
        _sage_layer_kernel,
        out_shape=jax.ShapeDtypeStruct((np_, fout), out_dtype),
        grid=grid,
        in_specs=[
            pl.BlockSpec((tm, np_), lambda i: (i, 0)),        # adjacency row tile
            pl.BlockSpec((np_, fin), lambda i: (0, 0)),       # full X (resident)
            pl.BlockSpec((tm, fin), lambda i: (i, 0)),        # X rows of this tile
            pl.BlockSpec((2 * fin, fout), lambda i: (0, 0)),  # stacked weights
            pl.BlockSpec((1, fout), lambda i: (0, 0)),        # bias
        ],
        out_specs=pl.BlockSpec((tm, fout), lambda i: (i, 0)),
        compiler_params=pltpu.CompilerParams(
            dimension_semantics=("parallel",),
            vmem_limit_bytes=32 * 1024 * 1024,
        ),
    )(adj, x, x, w_stack, bias)


def build_mean_adjacency(edge_index, num_nodes, num_nodes_padded):
    """Dense row-normalized adjacency A[d, s] = 1/deg(d) for edge s->d (bf16)."""
    src = edge_index[0]
    dst = edge_index[1]
    a = jnp.zeros((num_nodes_padded, num_nodes_padded), jnp.float32)
    a = a.at[dst, src].add(1.0)
    deg = a.sum(axis=-1, keepdims=True)
    a = a * jnp.where(deg > 0, 1.0 / jnp.maximum(deg, 1.0), 0.0)
    del num_nodes  # padded rows/cols are simply zero
    return a.astype(jnp.bfloat16)


@functools.partial(jax.jit, static_argnames=("num_nodes", "out_channels", "tm"))
def gconv_forward(x, edge_index, params, num_nodes, out_channels, tm=128):
    """GConv: SAGEConv(128->H) -> ReLU -> SAGEConv(H->O) -> ReLU."""
    np_ = _round_up(num_nodes, tm)
    adj = build_mean_adjacency(edge_index, num_nodes, np_)
    xp = jnp.zeros((np_, x.shape[1]), jnp.bfloat16)
    xp = xp.at[:num_nodes].set(x.astype(jnp.bfloat16))
    # Layer 1: output kept in bf16 (lane-padded to 128) -> fed straight to layer 2.
    h = sage_layer(adj, xp, params["w1"], params["b1"], tm=tm,
                   out_dtype=jnp.bfloat16)
    o = sage_layer(adj, h, params["w2"], params["b2"], tm=tm,
                   out_dtype=jnp.float32)
    return o[:num_nodes, :out_channels]


def init_raw_params(key, in_channels, hidden_channels, out_channels):
    """PyTorch-equivalent parameters, stored as [in, out] (pre-transposed)."""
    k1, k2, k3, k4, k5, k6 = jax.random.split(key, 6)
    s1 = 1.0 / jnp.sqrt(in_channels)
    s2 = 1.0 / jnp.sqrt(hidden_channels)
    u = jax.random.uniform
    return {
        "wl1": u(k1, (in_channels, hidden_channels), jnp.float32, -s1, s1),
        "wr1": u(k2, (in_channels, hidden_channels), jnp.float32, -s1, s1),
        "b1": u(k3, (hidden_channels,), jnp.float32, -s1, s1),
        "wl2": u(k4, (hidden_channels, out_channels), jnp.float32, -s2, s2),
        "wr2": u(k5, (hidden_channels, out_channels), jnp.float32, -s2, s2),
        "b2": u(k6, (out_channels,), jnp.float32, -s2, s2),
    }


def pack_params(raw, in_channels, hidden_channels, out_channels):
    """Zero-pad Fout to 128 lanes, stack [Wl; Wr] along K, cast weights to bf16."""
    hpad = _round_up(hidden_channels, LANES)
    opad = _round_up(out_channels, LANES)

    def stack_pad(wl, wr, fin_pad, fout_pad):
        fin, fout = wl.shape
        wl_p = jnp.zeros((fin_pad, fout_pad), jnp.float32).at[:fin, :fout].set(wl)
        wr_p = jnp.zeros((fin_pad, fout_pad), jnp.float32).at[:fin, :fout].set(wr)
        return jnp.concatenate([wl_p, wr_p], axis=0).astype(jnp.bfloat16)

    w1 = stack_pad(raw["wl1"], raw["wr1"], in_channels, hpad)   # [2*128, 128]
    b1 = jnp.zeros((1, hpad), jnp.float32).at[0, :hidden_channels].set(raw["b1"])
    w2 = stack_pad(raw["wl2"], raw["wr2"], hpad, opad)          # [2*128, 128]
    b2 = jnp.zeros((1, opad), jnp.float32).at[0, :out_channels].set(raw["b2"])
    return {"w1": w1, "b1": b1, "w2": w2, "b2": b2}


def reference_forward(x, edge_index, raw, num_nodes):
    """Pure-JAX f32 reference with identical semantics."""
    src, dst = edge_index[0], edge_index[1]
    a = jnp.zeros((num_nodes, num_nodes), jnp.float32).at[dst, src].add(1.0)
    deg = a.sum(axis=-1, keepdims=True)
    a = a * jnp.where(deg > 0, 1.0 / jnp.maximum(deg, 1.0), 0.0)
    h = jnp.maximum(a @ x @ raw["wl1"] + x @ raw["wr1"] + raw["b1"], 0.0)
    o = jnp.maximum(a @ h @ raw["wl2"] + h @ raw["wr2"] + raw["b2"], 0.0)
    return o


if __name__ == "__main__":
    # SAGEConv((128,128), H) fixes the input feature dim to 128.
    NUM_NODES = 128
    NUM_EDGES = 512
    IN_CHANNELS = 128
    HIDDEN_CHANNELS = 64
    OUT_CHANNELS = 32

    root = jax.random.PRNGKey(0)
    k_x, k_src, k_dst, k_par = jax.random.split(root, 4)

    x = jax.random.normal(k_x, (NUM_NODES, IN_CHANNELS), jnp.float32)
    edge_index = jnp.stack([
        jax.random.randint(k_src, (NUM_EDGES,), 0, NUM_NODES),
        jax.random.randint(k_dst, (NUM_EDGES,), 0, NUM_NODES),
    ], axis=0)

    raw = init_raw_params(k_par, IN_CHANNELS, HIDDEN_CHANNELS, OUT_CHANNELS)
    packed = pack_params(raw, IN_CHANNELS, HIDDEN_CHANNELS, OUT_CHANNELS)

    out = gconv_forward(x, edge_index, packed, NUM_NODES, OUT_CHANNELS, tm=128)
    out = jax.block_until_ready(out)

    ref = reference_forward(x, edge_index, raw, NUM_NODES)
    assert out.shape == (NUM_NODES, OUT_CHANNELS)
    # bf16 MXU operands (incl. 1/deg normalization) -> widened tolerance.
    assert jnp.allclose(out, ref, atol=5e-2, rtol=5e-2), float(
        jnp.max(jnp.abs(out - ref)))

    print("KERNEL_OK")
</pallas_src>

<mosaic_0001>
module attributes {stable_mosaic.version = 11 : i64} {
  func.func @_sage_layer_kernel(%arg0: i32, %arg1: memref<128x128xbf16, #tpu.memory_space<vmem>>, %arg2: memref<128x128xbf16, #tpu.memory_space<vmem>>, %arg3: memref<128x128xbf16, #tpu.memory_space<vmem>>, %arg4: memref<256x128xbf16, #tpu.memory_space<vmem>>, %arg5: memref<1x128xf32, #tpu.memory_space<vmem>>, %arg6: memref<128x128xbf16, #tpu.memory_space<vmem>>) attributes {dimension_semantics = [#tpu.dimension_semantics<parallel>], iteration_bounds = array<i64: 1>, scalar_prefetch = 0 : i64, scratch_operands = 0 : i64, tpu.core_type = #tpu.core_type<tc>, window_params = [{transform_indices = @transform_0, window_bounds = array<i64: 128, 128>}, {pipeline_mode = #tpu.pipeline_mode<synchronous>, transform_indices = @transform_1, window_bounds = array<i64: 128, 128>}, {transform_indices = @transform_2, window_bounds = array<i64: 128, 128>}, {pipeline_mode = #tpu.pipeline_mode<synchronous>, transform_indices = @transform_3, window_bounds = array<i64: 256, 128>}, {pipeline_mode = #tpu.pipeline_mode<synchronous>, transform_indices = @transform_4, window_bounds = array<i64: 1, 128>}, {transform_indices = @transform_5, window_bounds = array<i64: 128, 128>}]} {
    %c0 = arith.constant 0 : index
    %c0_0 = arith.constant 0 : index
    %0 = vector.load %arg1[%c0, %c0_0] : memref<128x128xbf16, #tpu.memory_space<vmem>>, vector<128x128xbf16>
    %c0_1 = arith.constant 0 : index
    %c0_2 = arith.constant 0 : index
    %1 = vector.load %arg2[%c0_1, %c0_2] : memref<128x128xbf16, #tpu.memory_space<vmem>>, vector<128x128xbf16>
    %cst = arith.constant dense<0.000000e+00> : vector<128x128xf32>
    %2 = tpu.matmul %0, %1, %cst {dimension_numbers = #tpu.dot_dimension_numbers<[1], [0], [0], [1], [0, 0, 1, 1], [], []>} : vector<128x128xbf16>, vector<128x128xbf16>, vector<128x128xf32> -> vector<128x128xf32>
    %3 = arith.truncf %2 : vector<128x128xf32> to vector<128x128xbf16>
    %c0_3 = arith.constant 0 : index
    %c0_4 = arith.constant 0 : index
    %4 = vector.load %arg3[%c0_3, %c0_4] : memref<128x128xbf16, #tpu.memory_space<vmem>>, vector<128x128xbf16>
    %5 = tpu.concatenate %3, %4 in 1 : vector<128x128xbf16>, vector<128x128xbf16> -> vector<128x256xbf16>
    %c0_5 = arith.constant 0 : index
    %c0_6 = arith.constant 0 : index
    %6 = vector.load %arg4[%c0_5, %c0_6] : memref<256x128xbf16, #tpu.memory_space<vmem>>, vector<256x128xbf16>
    %cst_7 = arith.constant dense<0.000000e+00> : vector<128x128xf32>
    %7 = tpu.matmul %5, %6, %cst_7 {dimension_numbers = #tpu.dot_dimension_numbers<[1], [0], [0], [1], [0, 0, 1, 1], [], []>} : vector<128x256xbf16>, vector<256x128xbf16>, vector<128x128xf32> -> vector<128x128xf32>
    %c0_8 = arith.constant 0 : index
    %c0_9 = arith.constant 0 : index
    %8 = vector.load %arg5[%c0_8, %c0_9] : memref<1x128xf32, #tpu.memory_space<vmem>>, vector<1x128xf32>
    %9 = vector.broadcast %8 : vector<1x128xf32> to vector<128x128xf32>
    %10 = arith.addf %7, %9 : vector<128x128xf32>
    %cst_10 = arith.constant 0.000000e+00 : f32
    %11 = vector.broadcast %cst_10 : f32 to vector<128x128xf32>
    %12 = arith.maximumf %10, %11 : vector<128x128xf32>
    %13 = arith.truncf %12 : vector<128x128xf32> to vector<128x128xbf16>
    %c0_11 = arith.constant 0 : index
    %c0_12 = arith.constant 0 : index
    %14 = vector.load %arg6[%c0_11, %c0_12] : memref<128x128xbf16, #tpu.memory_space<vmem>>, vector<128x128xbf16>
    tpu.vector_store %arg6[%c0_11, %c0_12], %13 {strides = array<i32>} : memref<128x128xbf16, #tpu.memory_space<vmem>>, vector<128x128xbf16>,
    return
  }
  func.func @transform_0(%arg0: i32) -> (i32, i32) {
    %c0_i32 = arith.constant 0 : i32
    %c0_i32_0 = arith.constant 0 : i32
    return %arg0, %c0_i32 : i32, i32
  }
  func.func @transform_1(%arg0: i32) -> (i32, i32) {
    %c0_i32 = arith.constant 0 : i32
    %c0_i32_0 = arith.constant 0 : i32
    %c0_i32_1 = arith.constant 0 : i32
    return %c0_i32, %c0_i32_0 : i32, i32
  }
  func.func @transform_2(%arg0: i32) -> (i32, i32) {
    %c0_i32 = arith.constant 0 : i32
    %c0_i32_0 = arith.constant 0 : i32
    return %arg0, %c0_i32 : i32, i32
  }
  func.func @transform_3(%arg0: i32) -> (i32, i32) {
    %c0_i32 = arith.constant 0 : i32
    %c0_i32_0 = arith.constant 0 : i32
    %c0_i32_1 = arith.constant 0 : i32
    return %c0_i32, %c0_i32_0 : i32, i32
  }
  func.func @transform_4(%arg0: i32) -> (i32, i32) {
    %c0_i32 = arith.constant 0 : i32
    %c0_i32_0 = arith.constant 0 : i32
    %c0_i32_1 = arith.constant 0 : i32
    return %c0_i32, %c0_i32_0 : i32, i32
  }
  func.func @transform_5(%arg0: i32) -> (i32, i32) {
    %c0_i32 = arith.constant 0 : i32
    %c0_i32_0 = arith.constant 0 : i32
    return %arg0, %c0_i32 : i32, i32
  }
}

module attributes {stable_mosaic.version = 11 : i64} {
  func.func @_sage_layer_kernel(%arg0: i32, %arg1: memref<128x128xbf16, #tpu.memory_space<vmem>>, %arg2: memref<128x128xbf16, #tpu.memory_space<vmem>>, %arg3: memref<128x128xbf16, #tpu.memory_space<vmem>>, %arg4: memref<256x128xbf16, #tpu.memory_space<vmem>>, %arg5: memref<1x128xf32, #tpu.memory_space<vmem>>, %arg6: memref<128x128xf32, #tpu.memory_space<vmem>>) attributes {dimension_semantics = [#tpu.dimension_semantics<parallel>], iteration_bounds = array<i64: 1>, scalar_prefetch = 0 : i64, scratch_operands = 0 : i64, tpu.core_type = #tpu.core_type<tc>, window_params = [{transform_indices = @transform_0, window_bounds = array<i64: 128, 128>}, {pipeline_mode = #tpu.pipeline_mode<synchronous>, transform_indices = @transform_1, window_bounds = array<i64: 128, 128>}, {transform_indices = @transform_2, window_bounds = array<i64: 128, 128>}, {pipeline_mode = #tpu.pipeline_mode<synchronous>, transform_indices = @transform_3, window_bounds = array<i64: 256, 128>}, {pipeline_mode = #tpu.pipeline_mode<synchronous>, transform_indices = @transform_4, window_bounds = array<i64: 1, 128>}, {transform_indices = @transform_5, window_bounds = array<i64: 128, 128>}]} {
    %c0 = arith.constant 0 : index
    %c0_0 = arith.constant 0 : index
    %0 = vector.load %arg1[%c0, %c0_0] : memref<128x128xbf16, #tpu.memory_space<vmem>>, vector<128x128xbf16>
    %c0_1 = arith.constant 0 : index
    %c0_2 = arith.constant 0 : index
    %1 = vector.load %arg2[%c0_1, %c0_2] : memref<128x128xbf16, #tpu.memory_space<vmem>>, vector<128x128xbf16>
    %cst = arith.constant dense<0.000000e+00> : vector<128x128xf32>
    %2 = tpu.matmul %0, %1, %cst {dimension_numbers = #tpu.dot_dimension_numbers<[1], [0], [0], [1], [0, 0, 1, 1], [], []>} : vector<128x128xbf16>, vector<128x128xbf16>, vector<128x128xf32> -> vector<128x128xf32>
    %3 = arith.truncf %2 : vector<128x128xf32> to vector<128x128xbf16>
    %c0_3 = arith.constant 0 : index
    %c0_4 = arith.constant 0 : index
    %4 = vector.load %arg3[%c0_3, %c0_4] : memref<128x128xbf16, #tpu.memory_space<vmem>>, vector<128x128xbf16>
    %5 = tpu.concatenate %3, %4 in 1 : vector<128x128xbf16>, vector<128x128xbf16> -> vector<128x256xbf16>
    %c0_5 = arith.constant 0 : index
    %c0_6 = arith.constant 0 : index
    %6 = vector.load %arg4[%c0_5, %c0_6] : memref<256x128xbf16, #tpu.memory_space<vmem>>, vector<256x128xbf16>
    %cst_7 = arith.constant dense<0.000000e+00> : vector<128x128xf32>
    %7 = tpu.matmul %5, %6, %cst_7 {dimension_numbers = #tpu.dot_dimension_numbers<[1], [0], [0], [1], [0, 0, 1, 1], [], []>} : vector<128x256xbf16>, vector<256x128xbf16>, vector<128x128xf32> -> vector<128x128xf32>
    %c0_8 = arith.constant 0 : index
    %c0_9 = arith.constant 0 : index
    %8 = vector.load %arg5[%c0_8, %c0_9] : memref<1x128xf32, #tpu.memory_space<vmem>>, vector<1x128xf32>
    %9 = vector.broadcast %8 : vector<1x128xf32> to vector<128x128xf32>
    %10 = arith.addf %7, %9 : vector<128x128xf32>
    %cst_10 = arith.constant 0.000000e+00 : f32
    %11 = vector.broadcast %cst_10 : f32 to vector<128x128xf32>
    %12 = arith.maximumf %10, %11 : vector<128x128xf32>
    %c0_11 = arith.constant 0 : index
    %c0_12 = arith.constant 0 : index
    %13 = vector.load %arg6[%c0_11, %c0_12] : memref<128x128xf32, #tpu.memory_space<vmem>>, vector<128x128xf32>
    tpu.vector_store %arg6[%c0_11, %c0_12], %12 {strides = array<i32>} : memref<128x128xf32, #tpu.memory_space<vmem>>, vector<128x128xf32>,
    return
  }
  func.func @transform_0(%arg0: i32) -> (i32, i32) {
    %c0_i32 = arith.constant 0 : i32
    %c0_i32_0 = arith.constant 0 : i32
    return %arg0, %c0_i32 : i32, i32
  }
  func.func @transform_1(%arg0: i32) -> (i32, i32) {
    %c0_i32 = arith.constant 0 : i32
    %c0_i32_0 = arith.constant 0 : i32
    %c0_i32_1 = arith.constant 0 : i32
    return %c0_i32, %c0_i32_0 : i32, i32
  }
  func.func @transform_2(%arg0: i32) -> (i32, i32) {
    %c0_i32 = arith.constant 0 : i32
    %c0_i32_0 = arith.constant 0 : i32
    return %arg0, %c0_i32 : i32, i32
  }
  func.func @transform_3(%arg0: i32) -> (i32, i32) {
    %c0_i32 = arith.constant 0 : i32
    %c0_i32_0 = arith.constant 0 : i32
    %c0_i32_1 = arith.constant 0 : i32
    return %c0_i32, %c0_i32_0 : i32, i32
  }
  func.func @transform_4(%arg0: i32) -> (i32, i32) {
    %c0_i32 = arith.constant 0 : i32
    %c0_i32_0 = arith.constant 0 : i32
    %c0_i32_1 = arith.constant 0 : i32
    return %c0_i32, %c0_i32_0 : i32, i32
  }
  func.func @transform_5(%arg0: i32) -> (i32, i32) {
    %c0_i32 = arith.constant 0 : i32
    %c0_i32_0 = arith.constant 0 : i32
    return %arg0, %c0_i32 : i32, i32
  }
}

</mosaic_0001>

<llo_original>
// kernel: gconv_forward.3
$region0: #{gconv_forward.3}
  #allocation0 [shape = 'u32[]', space=smem, size = 0x4, offset = 0x4, fixed_abs, tag = 'smem constant byte address 0x4 - core index']
  #allocation1 [shape = 'u32[72,128]{1,0:T(1,128)}', space=vmem, size = 0x9000, scoped, tag = 'internal scratch']
  %s0 = inlined_call_operand.vmem [shape: bf16[128,128], index: 0, kind: input, shape index: {}]
  %s1 = inlined_call_operand.vmem [shape: bf16[128,128], index: 1, kind: input, shape index: {}, may-alias: {1,2}]
  %s2 = inlined_call_operand.vmem [shape: bf16[128,128], index: 2, kind: input, shape index: {}, may-alias: {1,2}]
  %s3 = inlined_call_operand.vmem [shape: bf16[256,128], index: 3, kind: input, shape index: {}]
  %s4 = inlined_call_operand.vmem [shape: f32[1,128], index: 4, kind: input, shape index: {}]
  %s5 = inlined_call_operand.vmem [shape: f32[128,128], index: 5, kind: output, shape index: {}]
  %s6 = sld [smem:[#allocation0]]
  $region30: #{gconv_forward.3} parent=0
    _
  %s8 = ssub.s32 1, %s6
  %s9 = scalar_select 0, %s8, %s6
  // Predicated region
  $region2: #{gconv_forward.3} parent=0 // pred_check
    _
  $region3: #{gconv_forward.3} parent=0 // pred_check_branch
    %11 = sbr.rel (0) target = $region5
  $region4: #{gconv_forward.3} parent=0 // pred_region
    _
  $region5: #{gconv_forward.3} parent=0 // pred_fallthru
    _
  // Predicated region
  $region6: #{gconv_forward.3} parent=0 // pred_check
    _
  $region7: #{gconv_forward.3} parent=0 // pred_check_branch
    %13 = sbr.rel (0) target = $region9
  $region8: #{gconv_forward.3} parent=0 // pred_region
    _
  $region9: #{gconv_forward.3} parent=0 // pred_fallthru
    _
  // Predicated region
  $region10: #{gconv_forward.3} parent=0 // pred_check
    _
  $region11: #{gconv_forward.3} parent=0 // pred_check_branch
    %15 = sbr.rel (0) target = $region13
  $region12: #{gconv_forward.3} parent=0 // pred_region
    _
  $region13: #{gconv_forward.3} parent=0 // pred_fallthru
    _
  // Predicated region
  $region14: #{gconv_forward.3} parent=0 // pred_check
    _
  $region15: #{gconv_forward.3} parent=0 // pred_check_branch
    %17 = sbr.rel (0) target = $region17
  $region16: #{gconv_forward.3} parent=0 // pred_region
    _
  $region17: #{gconv_forward.3} parent=0 // pred_fallthru
    _
  // Predicated region
  $region18: #{gconv_forward.3} parent=0 // pred_check
    _
  $region19: #{gconv_forward.3} parent=0 // pred_check_branch
    %19 = sbr.rel (0) target = $region21
  $region20: #{gconv_forward.3} parent=0 // pred_region
    _
  $region21: #{gconv_forward.3} parent=0 // pred_fallthru
    _
  %v20 = vld [vmem:[%s0] sm:$0xf]
  %v21 = vld [vmem:[%s0 + $0x4] sm:$0xf]
  %v22 = vld [vmem:[%s0 + $0x8] sm:$0xf]
  %v23 = vld [vmem:[%s0 + $0xc] sm:$0xf]
  %v24 = vld [vmem:[%s0 + $0x10] sm:$0xf]
  %v25 = vld [vmem:[%s0 + $0x14] sm:$0xf]
  %v26 = vld [vmem:[%s0 + $0x18] sm:$0xf]
  %v27 = vld [vmem:[%s0 + $0x1c] sm:$0xf]
  %v28 = vld [vmem:[%s0 + $0x20] sm:$0xf]
  %v29 = vld [vmem:[%s0 + $0x24] sm:$0xf]
  %v30 = vld [vmem:[%s0 + $0x28] sm:$0xf]
  %v31 = vld [vmem:[%s0 + $0x2c] sm:$0xf]
  %v32 = vld [vmem:[%s0 + $0x30] sm:$0xf]
  %v33 = vld [vmem:[%s0 + $0x34] sm:$0xf]
  %v34 = vld [vmem:[%s0 + $0x38] sm:$0xf]
  %v35 = vld [vmem:[%s0 + $0x3c] sm:$0xf]
  %v36 = vld [vmem:[%s1] sm:$0xf]
  %v37 = vld [vmem:[%s1 + $0x4] sm:$0xf]
  %v38 = vld [vmem:[%s1 + $0x8] sm:$0xf]
  %v39 = vld [vmem:[%s1 + $0xc] sm:$0xf]
  %v40 = vld [vmem:[%s1 + $0x10] sm:$0xf]
  %v41 = vld [vmem:[%s1 + $0x14] sm:$0xf]
  %v42 = vld [vmem:[%s1 + $0x18] sm:$0xf]
  %v43 = vld [vmem:[%s1 + $0x1c] sm:$0xf]
  %v44 = vld [vmem:[%s1 + $0x20] sm:$0xf]
  %v45 = vld [vmem:[%s1 + $0x24] sm:$0xf]
  %v46 = vld [vmem:[%s1 + $0x28] sm:$0xf]
  %v47 = vld [vmem:[%s1 + $0x2c] sm:$0xf]
  %v48 = vld [vmem:[%s1 + $0x30] sm:$0xf]
  %v49 = vld [vmem:[%s1 + $0x34] sm:$0xf]
  %v50 = vld [vmem:[%s1 + $0x38] sm:$0xf]
  %v51 = vld [vmem:[%s1 + $0x3c] sm:$0xf]
  %v68 = vunpack.c.l.b16 %v20
  %v69 = vunpack.c.l.b16 %v21
  %v70 = vunpack.c.l.b16 %v22
  %v71 = vunpack.c.l.b16 %v23
  %v72 = vunpack.c.l.b16 %v24
  %v73 = vunpack.c.l.b16 %v25
  %v74 = vunpack.c.l.b16 %v26
  %v75 = vunpack.c.l.b16 %v27
  %v76 = vunpack.c.l.b16 %v28
  %v77 = vunpack.c.l.b16 %v29
  %v78 = vunpack.c.l.b16 %v30
  %v79 = vunpack.c.l.b16 %v31
  %v80 = vunpack.c.l.b16 %v32
  %v81 = vunpack.c.l.b16 %v33
  %v82 = vunpack.c.l.b16 %v34
  %v83 = vunpack.c.l.b16 %v35
  %v84 = vpack.c.b16 %v69, %v68
  %v85 = vpack.c.b16 %v71, %v70
  %v86 = vpack.c.b16 %v73, %v72
  %v87 = vpack.c.b16 %v75, %v74
  %v88 = vpack.c.b16 %v77, %v76
  %v89 = vpack.c.b16 %v79, %v78
  %v90 = vpack.c.b16 %v81, %v80
  %v91 = vpack.c.b16 %v83, %v82
  %v116 = vunpack.c.l.b16 %v36
  %v117 = vunpack.c.l.b16 %v37
  %v118 = vunpack.c.l.b16 %v38
  %v119 = vunpack.c.l.b16 %v39
  %v120 = vunpack.c.l.b16 %v40
  %v121 = vunpack.c.l.b16 %v41
  %v122 = vunpack.c.l.b16 %v42
  %v123 = vunpack.c.l.b16 %v43
  %v124 = vunpack.c.l.b16 %v44
  %v125 = vunpack.c.l.b16 %v45
  %v126 = vunpack.c.l.b16 %v46
  %v127 = vunpack.c.l.b16 %v47
  %v128 = vunpack.c.l.b16 %v48
  %v129 = vunpack.c.l.b16 %v49
  %v130 = vunpack.c.l.b16 %v50
  %v131 = vunpack.c.l.b16 %v51
  %v132 = vpack.c.b16 %v117, %v116
  %v133 = vpack.c.b16 %v119, %v118
  %v134 = vpack.c.b16 %v121, %v120
  %v135 = vpack.c.b16 %v123, %v122
  %v136 = vpack.c.b16 %v125, %v124
  %v137 = vpack.c.b16 %v127, %v126
  %v138 = vpack.c.b16 %v129, %v128
  %v139 = vpack.c.b16 %v131, %v130
  %148 = vmatpush.bf16.msra.mxu0 %v139
  %149 = vmatpush.bf16.msra.mxu0 %v138
  %150 = vmatpush.bf16.msra.mxu0 %v137
  %151 = vmatpush.bf16.msra.mxu0 %v136
  %152 = vmatpush.bf16.msra.mxu0 %v135
  %153 = vmatpush.bf16.msra.mxu0 %v134
  %154 = vmatpush.bf16.msra.mxu0 %v133
  %155 = vmatpush.bf16.msra.mxu0 %v132
  %156 = vmatmul.bf16.gmra.mxu0 %v84
  %v157 = vpop.f32.mrf.mxu0
  %v158 = vadd.f32 0.0, %v157
  %v159 = vpop.f32.mrf.mxu0
  %v160 = vadd.f32 0.0, %v159
  %161 = vmatmul.bf16.gmra.mxu0 %v85
  %v162 = vpop.f32.mrf.mxu0
  %v163 = vadd.f32 0.0, %v162
  %v164 = vpop.f32.mrf.mxu0
  %v165 = vadd.f32 0.0, %v164
  %166 = vmatmul.bf16.gmra.mxu0 %v86
  %v167 = vpop.f32.mrf.mxu0
  %v168 = vadd.f32 0.0, %v167
  %v169 = vpop.f32.mrf.mxu0
  %v170 = vadd.f32 0.0, %v169
  %171 = vmatmul.bf16.gmra.mxu0 %v87
  %v172 = vpop.f32.mrf.mxu0
  %v173 = vadd.f32 0.0, %v172
  %v174 = vpop.f32.mrf.mxu0
  %v175 = vadd.f32 0.0, %v174
  %176 = vmatmul.bf16.gmra.mxu0 %v88
  %v177 = vpop.f32.mrf.mxu0
  %v178 = vadd.f32 0.0, %v177
  %v179 = vpop.f32.mrf.mxu0
  %v180 = vadd.f32 0.0, %v179
  %181 = vmatmul.bf16.gmra.mxu0 %v89
  %v182 = vpop.f32.mrf.mxu0
  %v183 = vadd.f32 0.0, %v182
  %v184 = vpop.f32.mrf.mxu0
  %v185 = vadd.f32 0.0, %v184
  %186 = vmatmul.bf16.gmra.mxu0 %v90
  %v187 = vpop.f32.mrf.mxu0
  %v188 = vadd.f32 0.0, %v187
  %v189 = vpop.f32.mrf.mxu0
  %v190 = vadd.f32 0.0, %v189
  %191 = vmatmul.bf16.gmra.mxu0 %v91
  %v192 = vpop.f32.mrf.mxu0
  %v193 = vadd.f32 0.0, %v192
  %v194 = vpop.f32.mrf.mxu0
  %v195 = vadd.f32 0.0, %v194
  %196 = vdwg.mxu0
  %v197 = vpack.c.bf16 %v158, %v158
  %v198 = vpack.c.bf16 %v160, %v160
  %v199 = vpack.c.bf16 %v163, %v163
  %v200 = vpack.c.bf16 %v165, %v165
  %v201 = vpack.c.bf16 %v168, %v168
  %v202 = vpack.c.bf16 %v170, %v170
  %v203 = vpack.c.bf16 %v173, %v173
  %v204 = vpack.c.bf16 %v175, %v175
  %v205 = vpack.c.bf16 %v178, %v178
  %v206 = vpack.c.bf16 %v180, %v180
  %v207 = vpack.c.bf16 %v183, %v183
  %v208 = vpack.c.bf16 %v185, %v185
  %v209 = vpack.c.bf16 %v188, %v188
  %v210 = vpack.c.bf16 %v190, %v190
  %v211 = vpack.c.bf16 %v193, %v193
  %v212 = vpack.c.bf16 %v195, %v195
  %v213 = vld [vmem:[%s2] sm:$0xf]
  %v214 = vld [vmem:[%s2 + $0x4] sm:$0xf]
  %v215 = vld [vmem:[%s2 + $0x8] sm:$0xf]
  %v216 = vld [vmem:[%s2 + $0xc] sm:$0xf]
  %v217 = vld [vmem:[%s2 + $0x10] sm:$0xf]
  %v218 = vld [vmem:[%s2 + $0x14] sm:$0xf]
  %v219 = vld [vmem:[%s2 + $0x18] sm:$0xf]
  %v220 = vld [vmem:[%s2 + $0x1c] sm:$0xf]
  %v221 = vld [vmem:[%s2 + $0x20] sm:$0xf]
  %v222 = vld [vmem:[%s2 + $0x24] sm:$0xf]
  %v223 = vld [vmem:[%s2 + $0x28] sm:$0xf]
  %v224 = vld [vmem:[%s2 + $0x2c] sm:$0xf]
  %v225 = vld [vmem:[%s2 + $0x30] sm:$0xf]
  %v226 = vld [vmem:[%s2 + $0x34] sm:$0xf]
  %v227 = vld [vmem:[%s2 + $0x38] sm:$0xf]
  %v228 = vld [vmem:[%s2 + $0x3c] sm:$0xf]
  %v245 = vunpack.c.l.b16 %v197
  %v246 = vunpack.c.l.b16 %v198
  %v247 = vunpack.c.l.b16 %v199
  %v248 = vunpack.c.l.b16 %v200
  %v249 = vunpack.c.l.b16 %v201
  %v250 = vunpack.c.l.b16 %v202
  %v251 = vunpack.c.l.b16 %v203
  %v252 = vunpack.c.l.b16 %v204
  %v253 = vunpack.c.l.b16 %v205
  %v254 = vunpack.c.l.b16 %v206
  %v255 = vunpack.c.l.b16 %v207
  %v256 = vunpack.c.l.b16 %v208
  %v257 = vunpack.c.l.b16 %v209
  %v258 = vunpack.c.l.b16 %v210
  %v259 = vunpack.c.l.b16 %v211
  %v260 = vunpack.c.l.b16 %v212
  %v261 = vpack.c.b16 %v246, %v245
  %v262 = vpack.c.b16 %v248, %v247
  %v263 = vpack.c.b16 %v250, %v249
  %v264 = vpack.c.b16 %v252, %v251
  %v265 = vpack.c.b16 %v254, %v253
  %v266 = vpack.c.b16 %v256, %v255
  %v267 = vpack.c.b16 %v258, %v257
  %v268 = vpack.c.b16 %v260, %v259
  %v293 = vunpack.c.l.b16 %v213
  %v294 = vunpack.c.l.b16 %v214
  %v295 = vunpack.c.l.b16 %v215
  %v296 = vunpack.c.l.b16 %v216
  %v297 = vunpack.c.l.b16 %v217
  %v298 = vunpack.c.l.b16 %v218
  %v299 = vunpack.c.l.b16 %v219
  %v300 = vunpack.c.l.b16 %v220
  %v301 = vunpack.c.l.b16 %v221
  %v302 = vunpack.c.l.b16 %v222
  %v303 = vunpack.c.l.b16 %v223
  %v304 = vunpack.c.l.b16 %v224
  %v305 = vunpack.c.l.b16 %v225
  %v306 = vunpack.c.l.b16 %v226
  %v307 = vunpack.c.l.b16 %v227
  %v308 = vunpack.c.l.b16 %v228
  %v309 = vpack.c.b16 %v294, %v293
  %v310 = vpack.c.b16 %v296, %v295
  %v311 = vpack.c.b16 %v298, %v297
  %v312 = vpack.c.b16 %v300, %v299
  %v313 = vpack.c.b16 %v302, %v301
  %v314 = vpack.c.b16 %v304, %v303
  %v315 = vpack.c.b16 %v306, %v305
  %v316 = vpack.c.b16 %v308, %v307
  %v325 = vld [vmem:[%s3] sm:$0xf]
  %v326 = vld [vmem:[%s3 + $0x4] sm:$0xf]
  %v327 = vld [vmem:[%s3 + $0x8] sm:$0xf]
  %v328 = vld [vmem:[%s3 + $0xc] sm:$0xf]
  %v329 = vld [vmem:[%s3 + $0x10] sm:$0xf]
  %v330 = vld [vmem:[%s3 + $0x14] sm:$0xf]
  %v331 = vld [vmem:[%s3 + $0x18] sm:$0xf]
  %v332 = vld [vmem:[%s3 + $0x1c] sm:$0xf]
  %v333 = vld [vmem:[%s3 + $0x20] sm:$0xf]
  %v334 = vld [vmem:[%s3 + $0x24] sm:$0xf]
  %v335 = vld [vmem:[%s3 + $0x28] sm:$0xf]
  %v336 = vld [vmem:[%s3 + $0x2c] sm:$0xf]
  %v337 = vld [vmem:[%s3 + $0x30] sm:$0xf]
  %v338 = vld [vmem:[%s3 + $0x34] sm:$0xf]
  %v339 = vld [vmem:[%s3 + $0x38] sm:$0xf]
  %v340 = vld [vmem:[%s3 + $0x3c] sm:$0xf]
  %v341 = vld [vmem:[%s3 + $0x40] sm:$0xf]
  %v342 = vld [vmem:[%s3 + $0x44] sm:$0xf]
  %v343 = vld [vmem:[%s3 + $0x48] sm:$0xf]
  %v344 = vld [vmem:[%s3 + $0x4c] sm:$0xf]
  %v345 = vld [vmem:[%s3 + $0x50] sm:$0xf]
  %v346 = vld [vmem:[%s3 + $0x54] sm:$0xf]
  %v347 = vld [vmem:[%s3 + $0x58] sm:$0xf]
  %v348 = vld [vmem:[%s3 + $0x5c] sm:$0xf]
  %v349 = vld [vmem:[%s3 + $0x60] sm:$0xf]
  %v350 = vld [vmem:[%s3 + $0x64] sm:$0xf]
  %v351 = vld [vmem:[%s3 + $0x68] sm:$0xf]
  %v352 = vld [vmem:[%s3 + $0x6c] sm:$0xf]
  %v353 = vld [vmem:[%s3 + $0x70] sm:$0xf]
  %v354 = vld [vmem:[%s3 + $0x74] sm:$0xf]
  %v355 = vld [vmem:[%s3 + $0x78] sm:$0xf]
  %v356 = vld [vmem:[%s3 + $0x7c] sm:$0xf]
  %v357 = vld [vmem:[%s4] sm:$0x1]
  %v359 = vperm.slane %v357, 0
  %v393 = vunpack.c.l.b16 %v325
  %v394 = vunpack.c.l.b16 %v326
  %v395 = vunpack.c.l.b16 %v327
  %v396 = vunpack.c.l.b16 %v328
  %v397 = vunpack.c.l.b16 %v329
  %v398 = vunpack.c.l.b16 %v330
  %v399 = vunpack.c.l.b16 %v331
  %v400 = vunpack.c.l.b16 %v332
  %v401 = vunpack.c.l.b16 %v333
  %v402 = vunpack.c.l.b16 %v334
  %v403 = vunpack.c.l.b16 %v335
  %v404 = vunpack.c.l.b16 %v336
  %v405 = vunpack.c.l.b16 %v337
  %v406 = vunpack.c.l.b16 %v338
  %v407 = vunpack.c.l.b16 %v339
  %v408 = vunpack.c.l.b16 %v340
  %v409 = vunpack.c.l.b16 %v341
  %v410 = vunpack.c.l.b16 %v342
  %v411 = vunpack.c.l.b16 %v343
  %v412 = vunpack.c.l.b16 %v344
  %v413 = vunpack.c.l.b16 %v345
  %v414 = vunpack.c.l.b16 %v346
  %v415 = vunpack.c.l.b16 %v347
  %v416 = vunpack.c.l.b16 %v348
  %v417 = vunpack.c.l.b16 %v349
  %v418 = vunpack.c.l.b16 %v350
  %v419 = vunpack.c.l.b16 %v351
  %v420 = vunpack.c.l.b16 %v352
  %v421 = vunpack.c.l.b16 %v353
  %v422 = vunpack.c.l.b16 %v354
  %v423 = vunpack.c.l.b16 %v355
  %v424 = vunpack.c.l.b16 %v356
  %v425 = vpack.c.b16 %v394, %v393
  %v426 = vpack.c.b16 %v396, %v395
  %v427 = vpack.c.b16 %v398, %v397
  %v428 = vpack.c.b16 %v400, %v399
  %v429 = vpack.c.b16 %v402, %v401
  %v430 = vpack.c.b16 %v404, %v403
  %v431 = vpack.c.b16 %v406, %v405
  %v432 = vpack.c.b16 %v408, %v407
  %v433 = vpack.c.b16 %v410, %v409
  %v434 = vpack.c.b16 %v412, %v411
  %v435 = vpack.c.b16 %v414, %v413
  %v436 = vpack.c.b16 %v416, %v415
  %v437 = vpack.c.b16 %v418, %v417
  %v438 = vpack.c.b16 %v420, %v419
  %v439 = vpack.c.b16 %v422, %v421
  %v440 = vpack.c.b16 %v424, %v423
  %457 = vmatpush.bf16.msra.mxu0 %v432
  %458 = vmatpush.bf16.msra.mxu0 %v431
  %459 = vmatpush.bf16.msra.mxu0 %v430
  %460 = vmatpush.bf16.msra.mxu0 %v429
  %461 = vmatpush.bf16.msra.mxu0 %v428
  %462 = vmatpush.bf16.msra.mxu0 %v427
  %463 = vmatpush.bf16.msra.mxu0 %v426
  %464 = vmatpush.bf16.msra.mxu0 %v425
  %465 = vmatmul.bf16.gmra.mxu0 %v261
  %v466 = vpop.f32.mrf.mxu0
  %v467 = vadd.f32 %v359, %v466
  %v468 = vpop.f32.mrf.mxu0
  %v469 = vadd.f32 %v359, %v468
  %470 = vmatmul.bf16.gmra.mxu0 %v262
  %v471 = vpop.f32.mrf.mxu0
  %v472 = vadd.f32 %v359, %v471
  %v473 = vpop.f32.mrf.mxu0
  %v474 = vadd.f32 %v359, %v473
  %475 = vmatmul.bf16.gmra.mxu0 %v263
  %v476 = vpop.f32.mrf.mxu0
  %v477 = vadd.f32 %v359, %v476
  %v478 = vpop.f32.mrf.mxu0
  %v479 = vadd.f32 %v359, %v478
  %480 = vmatmul.bf16.gmra.mxu0 %v264
  %v481 = vpop.f32.mrf.mxu0
  %v482 = vadd.f32 %v359, %v481
  %v483 = vpop.f32.mrf.mxu0
  %v484 = vadd.f32 %v359, %v483
  %485 = vmatmul.bf16.gmra.mxu0 %v265
  %v486 = vpop.f32.mrf.mxu0
  %v487 = vadd.f32 %v359, %v486
  %v488 = vpop.f32.mrf.mxu0
  %v489 = vadd.f32 %v359, %v488
  %490 = vmatmul.bf16.gmra.mxu0 %v266
  %v491 = vpop.f32.mrf.mxu0
  %v492 = vadd.f32 %v359, %v491
  %v493 = vpop.f32.mrf.mxu0
  %v494 = vadd.f32 %v359, %v493
  %495 = vmatmul.bf16.gmra.mxu0 %v267
  %v496 = vpop.f32.mrf.mxu0
  %v497 = vadd.f32 %v359, %v496
  %v498 = vpop.f32.mrf.mxu0
  %v499 = vadd.f32 %v359, %v498
  %500 = vmatmul.bf16.gmra.mxu0 %v268
  %v501 = vpop.f32.mrf.mxu0
  %v502 = vadd.f32 %v359, %v501
  %v503 = vpop.f32.mrf.mxu0
  %v504 = vadd.f32 %v359, %v503
  %505 = vdwg.mxu0
  %506 = vmatpush.bf16.msra.mxu0 %v440
  %507 = vmatpush.bf16.msra.mxu0 %v439
  %508 = vmatpush.bf16.msra.mxu0 %v438
  %509 = vmatpush.bf16.msra.mxu0 %v437
  %510 = vmatpush.bf16.msra.mxu0 %v436
  %511 = vmatpush.bf16.msra.mxu0 %v435
  %512 = vmatpush.bf16.msra.mxu0 %v434
  %513 = vmatpush.bf16.msra.mxu0 %v433
  %514 = vmatmul.bf16.gmra.mxu0 %v309
  %v515 = vpop.f32.mrf.mxu0
  %v516 = vadd.f32 %v467, %v515
  %v517 = vpop.f32.mrf.mxu0
  %v518 = vadd.f32 %v469, %v517
  %519 = vmatmul.bf16.gmra.mxu0 %v310
  %v520 = vpop.f32.mrf.mxu0
  %v521 = vadd.f32 %v472, %v520
  %v522 = vpop.f32.mrf.mxu0
  %v523 = vadd.f32 %v474, %v522
  %524 = vmatmul.bf16.gmra.mxu0 %v311
  %v525 = vpop.f32.mrf.mxu0
  %v526 = vadd.f32 %v477, %v525
  %v527 = vpop.f32.mrf.mxu0
  %v528 = vadd.f32 %v479, %v527
  %529 = vmatmul.bf16.gmra.mxu0 %v312
  %v530 = vpop.f32.mrf.mxu0
  %v531 = vadd.f32 %v482, %v530
  %v532 = vpop.f32.mrf.mxu0
  %v533 = vadd.f32 %v484, %v532
  %534 = vmatmul.bf16.gmra.mxu0 %v313
  %v535 = vpop.f32.mrf.mxu0
  %v536 = vadd.f32 %v487, %v535
  %v537 = vpop.f32.mrf.mxu0
  %v538 = vadd.f32 %v489, %v537
  %539 = vmatmul.bf16.gmra.mxu0 %v314
  %v540 = vpop.f32.mrf.mxu0
  %v541 = vadd.f32 %v492, %v540
  %v542 = vpop.f32.mrf.mxu0
  %v543 = vadd.f32 %v494, %v542
  %544 = vmatmul.bf16.gmra.mxu0 %v315
  %v545 = vpop.f32.mrf.mxu0
  %v546 = vadd.f32 %v497, %v545
  %v547 = vpop.f32.mrf.mxu0
  %v548 = vadd.f32 %v499, %v547
  %549 = vmatmul.bf16.gmra.mxu0 %v316
  %v550 = vpop.f32.mrf.mxu0
  %v551 = vadd.f32 %v502, %v550
  %v552 = vpop.f32.mrf.mxu0
  %v553 = vadd.f32 %v504, %v552
  %554 = vdwg.mxu0
  %v555 = vmax.f32 %v516, 0.0
  %v556 = vmax.f32 %v518, 0.0
  %v557 = vmax.f32 %v521, 0.0
  %v558 = vmax.f32 %v523, 0.0
  %v559 = vmax.f32 %v526, 0.0
  %v560 = vmax.f32 %v528, 0.0
  %v561 = vmax.f32 %v531, 0.0
  %v562 = vmax.f32 %v533, 0.0
  %v563 = vmax.f32 %v536, 0.0
  %v564 = vmax.f32 %v538, 0.0
  %v565 = vmax.f32 %v541, 0.0
  %v566 = vmax.f32 %v543, 0.0
  %v567 = vmax.f32 %v546, 0.0
  %v568 = vmax.f32 %v548, 0.0
  %v569 = vmax.f32 %v551, 0.0
  %v570 = vmax.f32 %v553, 0.0
  %571 = vst [vmem:[%s5] sm:$0xff] %v555
  %572 = vst [vmem:[%s5 + $0x8] sm:$0xff] %v556
  %573 = vst [vmem:[%s5 + $0x10] sm:$0xff] %v557
  %574 = vst [vmem:[%s5 + $0x18] sm:$0xff] %v558
  %575 = vst [vmem:[%s5 + $0x20] sm:$0xff] %v559
  %576 = vst [vmem:[%s5 + $0x28] sm:$0xff] %v560
  %577 = vst [vmem:[%s5 + $0x30] sm:$0xff] %v561
  %578 = vst [vmem:[%s5 + $0x38] sm:$0xff] %v562
  %579 = vst [vmem:[%s5 + $0x40] sm:$0xff] %v563
  %580 = vst [vmem:[%s5 + $0x48] sm:$0xff] %v564
  %581 = vst [vmem:[%s5 + $0x50] sm:$0xff] %v565
  %582 = vst [vmem:[%s5 + $0x58] sm:$0xff] %v566
  %583 = vst [vmem:[%s5 + $0x60] sm:$0xff] %v567
  %584 = vst [vmem:[%s5 + $0x68] sm:$0xff] %v568
  %585 = vst [vmem:[%s5 + $0x70] sm:$0xff] %v569
  %586 = vst [vmem:[%s5 + $0x78] sm:$0xff] %v570
  // Predicated region
  $region22: #{gconv_forward.3} parent=0 // pred_check
    _
  $region23: #{gconv_forward.3} parent=0 // pred_check_branch
    %588 = sbr.rel (0) target = $region25
  $region24: #{gconv_forward.3} parent=0 // pred_region
    _
  $region25: #{gconv_forward.3} parent=0 // pred_fallthru
    _
  // Predicated region
  $region26: #{gconv_forward.3} parent=0 // pred_check
    _
  $region27: #{gconv_forward.3} parent=0 // pred_check_branch
    %590 = sbr.rel (0) target = $region29
  $region28: #{gconv_forward.3} parent=0 // pred_region
    _
  $region29: #{gconv_forward.3} parent=0 // pred_fallthru
    _

// kernel: gconv_forward.2
$region0: #{gconv_forward.2}
  #allocation0 [shape = 'u32[]', space=smem, size = 0x4, offset = 0x4, fixed_abs, tag = 'smem constant byte address 0x4 - core index']
  #allocation1 [shape = 'u32[72,128]{1,0:T(1,128)}', space=vmem, size = 0x9000, scoped, tag = 'internal scratch']
  %s0 = inlined_call_operand.vmem [shape: bf16[128,128], index: 0, kind: input, shape index: {}]
  %s1 = inlined_call_operand.vmem [shape: bf16[128,128], index: 1, kind: input, shape index: {}, may-alias: {1,2}]
  %s2 = inlined_call_operand.vmem [shape: bf16[128,128], index: 2, kind: input, shape index: {}, may-alias: {1,2}]
  %s3 = inlined_call_operand.vmem [shape: bf16[256,128], index: 3, kind: input, shape index: {}]
  %s4 = inlined_call_operand.vmem [shape: f32[1,128], index: 4, kind: input, shape index: {}]
  %s5 = inlined_call_operand.vmem [shape: bf16[128,128], index: 5, kind: output, shape index: {}]
  %s6 = sld [smem:[#allocation0]]
  $region30: #{gconv_forward.2} parent=0
    _
  %s8 = ssub.s32 1, %s6
  %s9 = scalar_select 0, %s8, %s6
  // Predicated region
  $region2: #{gconv_forward.2} parent=0 // pred_check
    _
  $region3: #{gconv_forward.2} parent=0 // pred_check_branch
    %11 = sbr.rel (0) target = $region5
  $region4: #{gconv_forward.2} parent=0 // pred_region
    _
  $region5: #{gconv_forward.2} parent=0 // pred_fallthru
    _
  // Predicated region
  $region6: #{gconv_forward.2} parent=0 // pred_check
    _
  $region7: #{gconv_forward.2} parent=0 // pred_check_branch
    %13 = sbr.rel (0) target = $region9
  $region8: #{gconv_forward.2} parent=0 // pred_region
    _
  $region9: #{gconv_forward.2} parent=0 // pred_fallthru
    _
  // Predicated region
  $region10: #{gconv_forward.2} parent=0 // pred_check
    _
  $region11: #{gconv_forward.2} parent=0 // pred_check_branch
    %15 = sbr.rel (0) target = $region13
  $region12: #{gconv_forward.2} parent=0 // pred_region
    _
  $region13: #{gconv_forward.2} parent=0 // pred_fallthru
    _
  // Predicated region
  $region14: #{gconv_forward.2} parent=0 // pred_check
    _
  $region15: #{gconv_forward.2} parent=0 // pred_check_branch
    %17 = sbr.rel (0) target = $region17
  $region16: #{gconv_forward.2} parent=0 // pred_region
    _
  $region17: #{gconv_forward.2} parent=0 // pred_fallthru
    _
  // Predicated region
  $region18: #{gconv_forward.2} parent=0 // pred_check
    _
  $region19: #{gconv_forward.2} parent=0 // pred_check_branch
    %19 = sbr.rel (0) target = $region21
  $region20: #{gconv_forward.2} parent=0 // pred_region
    _
  $region21: #{gconv_forward.2} parent=0 // pred_fallthru
    _
  %v20 = vld [vmem:[%s0] sm:$0xf]
  %v21 = vld [vmem:[%s0 + $0x4] sm:$0xf]
  %v22 = vld [vmem:[%s0 + $0x8] sm:$0xf]
  %v23 = vld [vmem:[%s0 + $0xc] sm:$0xf]
  %v24 = vld [vmem:[%s0 + $0x10] sm:$0xf]
  %v25 = vld [vmem:[%s0 + $0x14] sm:$0xf]
  %v26 = vld [vmem:[%s0 + $0x18] sm:$0xf]
  %v27 = vld [vmem:[%s0 + $0x1c] sm:$0xf]
  %v28 = vld [vmem:[%s0 + $0x20] sm:$0xf]
  %v29 = vld [vmem:[%s0 + $0x24] sm:$0xf]
  %v30 = vld [vmem:[%s0 + $0x28] sm:$0xf]
  %v31 = vld [vmem:[%s0 + $0x2c] sm:$0xf]
  %v32 = vld [vmem:[%s0 + $0x30] sm:$0xf]
  %v33 = vld [vmem:[%s0 + $0x34] sm:$0xf]
  %v34 = vld [vmem:[%s0 + $0x38] sm:$0xf]
  %v35 = vld [vmem:[%s0 + $0x3c] sm:$0xf]
  %v36 = vld [vmem:[%s1] sm:$0xf]
  %v37 = vld [vmem:[%s1 + $0x4] sm:$0xf]
  %v38 = vld [vmem:[%s1 + $0x8] sm:$0xf]
  %v39 = vld [vmem:[%s1 + $0xc] sm:$0xf]
  %v40 = vld [vmem:[%s1 + $0x10] sm:$0xf]
  %v41 = vld [vmem:[%s1 + $0x14] sm:$0xf]
  %v42 = vld [vmem:[%s1 + $0x18] sm:$0xf]
  %v43 = vld [vmem:[%s1 + $0x1c] sm:$0xf]
  %v44 = vld [vmem:[%s1 + $0x20] sm:$0xf]
  %v45 = vld [vmem:[%s1 + $0x24] sm:$0xf]
  %v46 = vld [vmem:[%s1 + $0x28] sm:$0xf]
  %v47 = vld [vmem:[%s1 + $0x2c] sm:$0xf]
  %v48 = vld [vmem:[%s1 + $0x30] sm:$0xf]
  %v49 = vld [vmem:[%s1 + $0x34] sm:$0xf]
  %v50 = vld [vmem:[%s1 + $0x38] sm:$0xf]
  %v51 = vld [vmem:[%s1 + $0x3c] sm:$0xf]
  %v68 = vunpack.c.l.b16 %v20
  %v69 = vunpack.c.l.b16 %v21
  %v70 = vunpack.c.l.b16 %v22
  %v71 = vunpack.c.l.b16 %v23
  %v72 = vunpack.c.l.b16 %v24
  %v73 = vunpack.c.l.b16 %v25
  %v74 = vunpack.c.l.b16 %v26
  %v75 = vunpack.c.l.b16 %v27
  %v76 = vunpack.c.l.b16 %v28
  %v77 = vunpack.c.l.b16 %v29
  %v78 = vunpack.c.l.b16 %v30
  %v79 = vunpack.c.l.b16 %v31
  %v80 = vunpack.c.l.b16 %v32
  %v81 = vunpack.c.l.b16 %v33
  %v82 = vunpack.c.l.b16 %v34
  %v83 = vunpack.c.l.b16 %v35
  %v84 = vpack.c.b16 %v69, %v68
  %v85 = vpack.c.b16 %v71, %v70
  %v86 = vpack.c.b16 %v73, %v72
  %v87 = vpack.c.b16 %v75, %v74
  %v88 = vpack.c.b16 %v77, %v76
  %v89 = vpack.c.b16 %v79, %v78
  %v90 = vpack.c.b16 %v81, %v80
  %v91 = vpack.c.b16 %v83, %v82
  %v116 = vunpack.c.l.b16 %v36
  %v117 = vunpack.c.l.b16 %v37
  %v118 = vunpack.c.l.b16 %v38
  %v119 = vunpack.c.l.b16 %v39
  %v120 = vunpack.c.l.b16 %v40
  %v121 = vunpack.c.l.b16 %v41
  %v122 = vunpack.c.l.b16 %v42
  %v123 = vunpack.c.l.b16 %v43
  %v124 = vunpack.c.l.b16 %v44
  %v125 = vunpack.c.l.b16 %v45
  %v126 = vunpack.c.l.b16 %v46
  %v127 = vunpack.c.l.b16 %v47
  %v128 = vunpack.c.l.b16 %v48
  %v129 = vunpack.c.l.b16 %v49
  %v130 = vunpack.c.l.b16 %v50
  %v131 = vunpack.c.l.b16 %v51
  %v132 = vpack.c.b16 %v117, %v116
  %v133 = vpack.c.b16 %v119, %v118
  %v134 = vpack.c.b16 %v121, %v120
  %v135 = vpack.c.b16 %v123, %v122
  %v136 = vpack.c.b16 %v125, %v124
  %v137 = vpack.c.b16 %v127, %v126
  %v138 = vpack.c.b16 %v129, %v128
  %v139 = vpack.c.b16 %v131, %v130
  %148 = vmatpush.bf16.msra.mxu0 %v139
  %149 = vmatpush.bf16.msra.mxu0 %v138
  %150 = vmatpush.bf16.msra.mxu0 %v137
  %151 = vmatpush.bf16.msra.mxu0 %v136
  %152 = vmatpush.bf16.msra.mxu0 %v135
  %153 = vmatpush.bf16.msra.mxu0 %v134
  %154 = vmatpush.bf16.msra.mxu0 %v133
  %155 = vmatpush.bf16.msra.mxu0 %v132
  %156 = vmatmul.bf16.gmra.mxu0 %v84
  %v157 = vpop.f32.mrf.mxu0
  %v158 = vadd.f32 0.0, %v157
  %v159 = vpop.f32.mrf.mxu0
  %v160 = vadd.f32 0.0, %v159
  %161 = vmatmul.bf16.gmra.mxu0 %v85
  %v162 = vpop.f32.mrf.mxu0
  %v163 = vadd.f32 0.0, %v162
  %v164 = vpop.f32.mrf.mxu0
  %v165 = vadd.f32 0.0, %v164
  %166 = vmatmul.bf16.gmra.mxu0 %v86
  %v167 = vpop.f32.mrf.mxu0
  %v168 = vadd.f32 0.0, %v167
  %v169 = vpop.f32.mrf.mxu0
  %v170 = vadd.f32 0.0, %v169
  %171 = vmatmul.bf16.gmra.mxu0 %v87
  %v172 = vpop.f32.mrf.mxu0
  %v173 = vadd.f32 0.0, %v172
  %v174 = vpop.f32.mrf.mxu0
  %v175 = vadd.f32 0.0, %v174
  %176 = vmatmul.bf16.gmra.mxu0 %v88
  %v177 = vpop.f32.mrf.mxu0
  %v178 = vadd.f32 0.0, %v177
  %v179 = vpop.f32.mrf.mxu0
  %v180 = vadd.f32 0.0, %v179
  %181 = vmatmul.bf16.gmra.mxu0 %v89
  %v182 = vpop.f32.mrf.mxu0
  %v183 = vadd.f32 0.0, %v182
  %v184 = vpop.f32.mrf.mxu0
  %v185 = vadd.f32 0.0, %v184
  %186 = vmatmul.bf16.gmra.mxu0 %v90
  %v187 = vpop.f32.mrf.mxu0
  %v188 = vadd.f32 0.0, %v187
  %v189 = vpop.f32.mrf.mxu0
  %v190 = vadd.f32 0.0, %v189
  %191 = vmatmul.bf16.gmra.mxu0 %v91
  %v192 = vpop.f32.mrf.mxu0
  %v193 = vadd.f32 0.0, %v192
  %v194 = vpop.f32.mrf.mxu0
  %v195 = vadd.f32 0.0, %v194
  %196 = vdwg.mxu0
  %v197 = vpack.c.bf16 %v158, %v158
  %v198 = vpack.c.bf16 %v160, %v160
  %v199 = vpack.c.bf16 %v163, %v163
  %v200 = vpack.c.bf16 %v165, %v165
  %v201 = vpack.c.bf16 %v168, %v168
  %v202 = vpack.c.bf16 %v170, %v170
  %v203 = vpack.c.bf16 %v173, %v173
  %v204 = vpack.c.bf16 %v175, %v175
  %v205 = vpack.c.bf16 %v178, %v178
  %v206 = vpack.c.bf16 %v180, %v180
  %v207 = vpack.c.bf16 %v183, %v183
  %v208 = vpack.c.bf16 %v185, %v185
  %v209 = vpack.c.bf16 %v188, %v188
  %v210 = vpack.c.bf16 %v190, %v190
  %v211 = vpack.c.bf16 %v193, %v193
  %v212 = vpack.c.bf16 %v195, %v195
  %v213 = vld [vmem:[%s2] sm:$0xf]
  %v214 = vld [vmem:[%s2 + $0x4] sm:$0xf]
  %v215 = vld [vmem:[%s2 + $0x8] sm:$0xf]
  %v216 = vld [vmem:[%s2 + $0xc] sm:$0xf]
  %v217 = vld [vmem:[%s2 + $0x10] sm:$0xf]
  %v218 = vld [vmem:[%s2 + $0x14] sm:$0xf]
  %v219 = vld [vmem:[%s2 + $0x18] sm:$0xf]
  %v220 = vld [vmem:[%s2 + $0x1c] sm:$0xf]
  %v221 = vld [vmem:[%s2 + $0x20] sm:$0xf]
  %v222 = vld [vmem:[%s2 + $0x24] sm:$0xf]
  %v223 = vld [vmem:[%s2 + $0x28] sm:$0xf]
  %v224 = vld [vmem:[%s2 + $0x2c] sm:$0xf]
  %v225 = vld [vmem:[%s2 + $0x30] sm:$0xf]
  %v226 = vld [vmem:[%s2 + $0x34] sm:$0xf]
  %v227 = vld [vmem:[%s2 + $0x38] sm:$0xf]
  %v228 = vld [vmem:[%s2 + $0x3c] sm:$0xf]
  %v245 = vunpack.c.l.b16 %v197
  %v246 = vunpack.c.l.b16 %v198
  %v247 = vunpack.c.l.b16 %v199
  %v248 = vunpack.c.l.b16 %v200
  %v249 = vunpack.c.l.b16 %v201
  %v250 = vunpack.c.l.b16 %v202
  %v251 = vunpack.c.l.b16 %v203
  %v252 = vunpack.c.l.b16 %v204
  %v253 = vunpack.c.l.b16 %v205
  %v254 = vunpack.c.l.b16 %v206
  %v255 = vunpack.c.l.b16 %v207
  %v256 = vunpack.c.l.b16 %v208
  %v257 = vunpack.c.l.b16 %v209
  %v258 = vunpack.c.l.b16 %v210
  %v259 = vunpack.c.l.b16 %v211
  %v260 = vunpack.c.l.b16 %v212
  %v261 = vpack.c.b16 %v246, %v245
  %v262 = vpack.c.b16 %v248, %v247
  %v263 = vpack.c.b16 %v250, %v249
  %v264 = vpack.c.b16 %v252, %v251
  %v265 = vpack.c.b16 %v254, %v253
  %v266 = vpack.c.b16 %v256, %v255
  %v267 = vpack.c.b16 %v258, %v257
  %v268 = vpack.c.b16 %v260, %v259
  %v293 = vunpack.c.l.b16 %v213
  %v294 = vunpack.c.l.b16 %v214
  %v295 = vunpack.c.l.b16 %v215
  %v296 = vunpack.c.l.b16 %v216
  %v297 = vunpack.c.l.b16 %v217
  %v298 = vunpack.c.l.b16 %v218
  %v299 = vunpack.c.l.b16 %v219
  %v300 = vunpack.c.l.b16 %v220
  %v301 = vunpack.c.l.b16 %v221
  %v302 = vunpack.c.l.b16 %v222
  %v303 = vunpack.c.l.b16 %v223
  %v304 = vunpack.c.l.b16 %v224
  %v305 = vunpack.c.l.b16 %v225
  %v306 = vunpack.c.l.b16 %v226
  %v307 = vunpack.c.l.b16 %v227
  %v308 = vunpack.c.l.b16 %v228
  %v309 = vpack.c.b16 %v294, %v293
  %v310 = vpack.c.b16 %v296, %v295
  %v311 = vpack.c.b16 %v298, %v297
  %v312 = vpack.c.b16 %v300, %v299
  %v313 = vpack.c.b16 %v302, %v301
  %v314 = vpack.c.b16 %v304, %v303
  %v315 = vpack.c.b16 %v306, %v305
  %v316 = vpack.c.b16 %v308, %v307
  %v325 = vld [vmem:[%s3] sm:$0xf]
  %v326 = vld [vmem:[%s3 + $0x4] sm:$0xf]
  %v327 = vld [vmem:[%s3 + $0x8] sm:$0xf]
  %v328 = vld [vmem:[%s3 + $0xc] sm:$0xf]
  %v329 = vld [vmem:[%s3 + $0x10] sm:$0xf]
  %v330 = vld [vmem:[%s3 + $0x14] sm:$0xf]
  %v331 = vld [vmem:[%s3 + $0x18] sm:$0xf]
  %v332 = vld [vmem:[%s3 + $0x1c] sm:$0xf]
  %v333 = vld [vmem:[%s3 + $0x20] sm:$0xf]
  %v334 = vld [vmem:[%s3 + $0x24] sm:$0xf]
  %v335 = vld [vmem:[%s3 + $0x28] sm:$0xf]
  %v336 = vld [vmem:[%s3 + $0x2c] sm:$0xf]
  %v337 = vld [vmem:[%s3 + $0x30] sm:$0xf]
  %v338 = vld [vmem:[%s3 + $0x34] sm:$0xf]
  %v339 = vld [vmem:[%s3 + $0x38] sm:$0xf]
  %v340 = vld [vmem:[%s3 + $0x3c] sm:$0xf]
  %v341 = vld [vmem:[%s3 + $0x40] sm:$0xf]
  %v342 = vld [vmem:[%s3 + $0x44] sm:$0xf]
  %v343 = vld [vmem:[%s3 + $0x48] sm:$0xf]
  %v344 = vld [vmem:[%s3 + $0x4c] sm:$0xf]
  %v345 = vld [vmem:[%s3 + $0x50] sm:$0xf]
  %v346 = vld [vmem:[%s3 + $0x54] sm:$0xf]
  %v347 = vld [vmem:[%s3 + $0x58] sm:$0xf]
  %v348 = vld [vmem:[%s3 + $0x5c] sm:$0xf]
  %v349 = vld [vmem:[%s3 + $0x60] sm:$0xf]
  %v350 = vld [vmem:[%s3 + $0x64] sm:$0xf]
  %v351 = vld [vmem:[%s3 + $0x68] sm:$0xf]
  %v352 = vld [vmem:[%s3 + $0x6c] sm:$0xf]
  %v353 = vld [vmem:[%s3 + $0x70] sm:$0xf]
  %v354 = vld [vmem:[%s3 + $0x74] sm:$0xf]
  %v355 = vld [vmem:[%s3 + $0x78] sm:$0xf]
  %v356 = vld [vmem:[%s3 + $0x7c] sm:$0xf]
  %v357 = vld [vmem:[%s4] sm:$0x1]
  %v359 = vperm.slane %v357, 0
  %v393 = vunpack.c.l.b16 %v325
  %v394 = vunpack.c.l.b16 %v326
  %v395 = vunpack.c.l.b16 %v327
  %v396 = vunpack.c.l.b16 %v328
  %v397 = vunpack.c.l.b16 %v329
  %v398 = vunpack.c.l.b16 %v330
  %v399 = vunpack.c.l.b16 %v331
  %v400 = vunpack.c.l.b16 %v332
  %v401 = vunpack.c.l.b16 %v333
  %v402 = vunpack.c.l.b16 %v334
  %v403 = vunpack.c.l.b16 %v335
  %v404 = vunpack.c.l.b16 %v336
  %v405 = vunpack.c.l.b16 %v337
  %v406 = vunpack.c.l.b16 %v338
  %v407 = vunpack.c.l.b16 %v339
  %v408 = vunpack.c.l.b16 %v340
  %v409 = vunpack.c.l.b16 %v341
  %v410 = vunpack.c.l.b16 %v342
  %v411 = vunpack.c.l.b16 %v343
  %v412 = vunpack.c.l.b16 %v344
  %v413 = vunpack.c.l.b16 %v345
  %v414 = vunpack.c.l.b16 %v346
  %v415 = vunpack.c.l.b16 %v347
  %v416 = vunpack.c.l.b16 %v348
  %v417 = vunpack.c.l.b16 %v349
  %v418 = vunpack.c.l.b16 %v350
  %v419 = vunpack.c.l.b16 %v351
  %v420 = vunpack.c.l.b16 %v352
  %v421 = vunpack.c.l.b16 %v353
  %v422 = vunpack.c.l.b16 %v354
  %v423 = vunpack.c.l.b16 %v355
  %v424 = vunpack.c.l.b16 %v356
  %v425 = vpack.c.b16 %v394, %v393
  %v426 = vpack.c.b16 %v396, %v395
  %v427 = vpack.c.b16 %v398, %v397
  %v428 = vpack.c.b16 %v400, %v399
  %v429 = vpack.c.b16 %v402, %v401
  %v430 = vpack.c.b16 %v404, %v403
  %v431 = vpack.c.b16 %v406, %v405
  %v432 = vpack.c.b16 %v408, %v407
  %v433 = vpack.c.b16 %v410, %v409
  %v434 = vpack.c.b16 %v412, %v411
  %v435 = vpack.c.b16 %v414, %v413
  %v436 = vpack.c.b16 %v416, %v415
  %v437 = vpack.c.b16 %v418, %v417
  %v438 = vpack.c.b16 %v420, %v419
  %v439 = vpack.c.b16 %v422, %v421
  %v440 = vpack.c.b16 %v424, %v423
  %457 = vmatpush.bf16.msra.mxu0 %v432
  %458 = vmatpush.bf16.msra.mxu0 %v431
  %459 = vmatpush.bf16.msra.mxu0 %v430
  %460 = vmatpush.bf16.msra.mxu0 %v429
  %461 = vmatpush.bf16.msra.mxu0 %v428
  %462 = vmatpush.bf16.msra.mxu0 %v427
  %463 = vmatpush.bf16.msra.mxu0 %v426
  %464 = vmatpush.bf16.msra.mxu0 %v425
  %465 = vmatmul.bf16.gmra.mxu0 %v261
  %v466 = vpop.f32.mrf.mxu0
  %v467 = vadd.f32 %v359, %v466
  %v468 = vpop.f32.mrf.mxu0
  %v469 = vadd.f32 %v359, %v468
  %470 = vmatmul.bf16.gmra.mxu0 %v262
  %v471 = vpop.f32.mrf.mxu0
  %v472 = vadd.f32 %v359, %v471
  %v473 = vpop.f32.mrf.mxu0
  %v474 = vadd.f32 %v359, %v473
  %475 = vmatmul.bf16.gmra.mxu0 %v263
  %v476 = vpop.f32.mrf.mxu0
  %v477 = vadd.f32 %v359, %v476
  %v478 = vpop.f32.mrf.mxu0
  %v479 = vadd.f32 %v359, %v478
  %480 = vmatmul.bf16.gmra.mxu0 %v264
  %v481 = vpop.f32.mrf.mxu0
  %v482 = vadd.f32 %v359, %v481
  %v483 = vpop.f32.mrf.mxu0
  %v484 = vadd.f32 %v359, %v483
  %485 = vmatmul.bf16.gmra.mxu0 %v265
  %v486 = vpop.f32.mrf.mxu0
  %v487 = vadd.f32 %v359, %v486
  %v488 = vpop.f32.mrf.mxu0
  %v489 = vadd.f32 %v359, %v488
  %490 = vmatmul.bf16.gmra.mxu0 %v266
  %v491 = vpop.f32.mrf.mxu0
  %v492 = vadd.f32 %v359, %v491
  %v493 = vpop.f32.mrf.mxu0
  %v494 = vadd.f32 %v359, %v493
  %495 = vmatmul.bf16.gmra.mxu0 %v267
  %v496 = vpop.f32.mrf.mxu0
  %v497 = vadd.f32 %v359, %v496
  %v498 = vpop.f32.mrf.mxu0
  %v499 = vadd.f32 %v359, %v498
  %500 = vmatmul.bf16.gmra.mxu0 %v268
  %v501 = vpop.f32.mrf.mxu0
  %v502 = vadd.f32 %v359, %v501
  %v503 = vpop.f32.mrf.mxu0
  %v504 = vadd.f32 %v359, %v503
  %505 = vdwg.mxu0
  %506 = vmatpush.bf16.msra.mxu0 %v440
  %507 = vmatpush.bf16.msra.mxu0 %v439
  %508 = vmatpush.bf16.msra.mxu0 %v438
  %509 = vmatpush.bf16.msra.mxu0 %v437
  %510 = vmatpush.bf16.msra.mxu0 %v436
  %511 = vmatpush.bf16.msra.mxu0 %v435
  %512 = vmatpush.bf16.msra.mxu0 %v434
  %513 = vmatpush.bf16.msra.mxu0 %v433
  %514 = vmatmul.bf16.gmra.mxu0 %v309
  %v515 = vpop.f32.mrf.mxu0
  %v516 = vadd.f32 %v467, %v515
  %v517 = vpop.f32.mrf.mxu0
  %v518 = vadd.f32 %v469, %v517
  %519 = vmatmul.bf16.gmra.mxu0 %v310
  %v520 = vpop.f32.mrf.mxu0
  %v521 = vadd.f32 %v472, %v520
  %v522 = vpop.f32.mrf.mxu0
  %v523 = vadd.f32 %v474, %v522
  %524 = vmatmul.bf16.gmra.mxu0 %v311
  %v525 = vpop.f32.mrf.mxu0
  %v526 = vadd.f32 %v477, %v525
  %v527 = vpop.f32.mrf.mxu0
  %v528 = vadd.f32 %v479, %v527
  %529 = vmatmul.bf16.gmra.mxu0 %v312
  %v530 = vpop.f32.mrf.mxu0
  %v531 = vadd.f32 %v482, %v530
  %v532 = vpop.f32.mrf.mxu0
  %v533 = vadd.f32 %v484, %v532
  %534 = vmatmul.bf16.gmra.mxu0 %v313
  %v535 = vpop.f32.mrf.mxu0
  %v536 = vadd.f32 %v487, %v535
  %v537 = vpop.f32.mrf.mxu0
  %v538 = vadd.f32 %v489, %v537
  %539 = vmatmul.bf16.gmra.mxu0 %v314
  %v540 = vpop.f32.mrf.mxu0
  %v541 = vadd.f32 %v492, %v540
  %v542 = vpop.f32.mrf.mxu0
  %v543 = vadd.f32 %v494, %v542
  %544 = vmatmul.bf16.gmra.mxu0 %v315
  %v545 = vpop.f32.mrf.mxu0
  %v546 = vadd.f32 %v497, %v545
  %v547 = vpop.f32.mrf.mxu0
  %v548 = vadd.f32 %v499, %v547
  %549 = vmatmul.bf16.gmra.mxu0 %v316
  %v550 = vpop.f32.mrf.mxu0
  %v551 = vadd.f32 %v502, %v550
  %v552 = vpop.f32.mrf.mxu0
  %v553 = vadd.f32 %v504, %v552
  %554 = vdwg.mxu0
  %v555 = vmax.f32 %v516, 0.0
  %v556 = vmax.f32 %v518, 0.0
  %v557 = vmax.f32 %v521, 0.0
  %v558 = vmax.f32 %v523, 0.0
  %v559 = vmax.f32 %v526, 0.0
  %v560 = vmax.f32 %v528, 0.0
  %v561 = vmax.f32 %v531, 0.0
  %v562 = vmax.f32 %v533, 0.0
  %v563 = vmax.f32 %v536, 0.0
  %v564 = vmax.f32 %v538, 0.0
  %v565 = vmax.f32 %v541, 0.0
  %v566 = vmax.f32 %v543, 0.0
  %v567 = vmax.f32 %v546, 0.0
  %v568 = vmax.f32 %v548, 0.0
  %v569 = vmax.f32 %v551, 0.0
  %v570 = vmax.f32 %v553, 0.0
  %v571 = vpack.c.bf16 %v555, %v555
  %v572 = vpack.c.bf16 %v556, %v556
  %v573 = vpack.c.bf16 %v557, %v557
  %v574 = vpack.c.bf16 %v558, %v558
  %v575 = vpack.c.bf16 %v559, %v559
  %v576 = vpack.c.bf16 %v560, %v560
  %v577 = vpack.c.bf16 %v561, %v561
  %v578 = vpack.c.bf16 %v562, %v562
  %v579 = vpack.c.bf16 %v563, %v563
  %v580 = vpack.c.bf16 %v564, %v564
  %v581 = vpack.c.bf16 %v565, %v565
  %v582 = vpack.c.bf16 %v566, %v566
  %v583 = vpack.c.bf16 %v567, %v567
  %v584 = vpack.c.bf16 %v568, %v568
  %v585 = vpack.c.bf16 %v569, %v569
  %v586 = vpack.c.bf16 %v570, %v570
  %587 = vst [vmem:[%s5] sm:$0xf] %v571
  %588 = vst [vmem:[%s5 + $0x4] sm:$0xf] %v572
  %589 = vst [vmem:[%s5 + $0x8] sm:$0xf] %v573
  %590 = vst [vmem:[%s5 + $0xc] sm:$0xf] %v574
  %591 = vst [vmem:[%s5 + $0x10] sm:$0xf] %v575
  %592 = vst [vmem:[%s5 + $0x14] sm:$0xf] %v576
  %593 = vst [vmem:[%s5 + $0x18] sm:$0xf] %v577
  %594 = vst [vmem:[%s5 + $0x1c] sm:$0xf] %v578
  %595 = vst [vmem:[%s5 + $0x20] sm:$0xf] %v579
  %596 = vst [vmem:[%s5 + $0x24] sm:$0xf] %v580
  %597 = vst [vmem:[%s5 + $0x28] sm:$0xf] %v581
  %598 = vst [vmem:[%s5 + $0x2c] sm:$0xf] %v582
  %599 = vst [vmem:[%s5 + $0x30] sm:$0xf] %v583
  %600 = vst [vmem:[%s5 + $0x34] sm:$0xf] %v584
  %601 = vst [vmem:[%s5 + $0x38] sm:$0xf] %v585
  %602 = vst [vmem:[%s5 + $0x3c] sm:$0xf] %v586
  // Predicated region
  $region22: #{gconv_forward.2} parent=0 // pred_check
    _
  $region23: #{gconv_forward.2} parent=0 // pred_check_branch
    %604 = sbr.rel (0) target = $region25
  $region24: #{gconv_forward.2} parent=0 // pred_region
    _
  $region25: #{gconv_forward.2} parent=0 // pred_fallthru
    _
  // Predicated region
  $region26: #{gconv_forward.2} parent=0 // pred_check
    _
  $region27: #{gconv_forward.2} parent=0 // pred_check_branch
    %606 = sbr.rel (0) target = $region29
  $region28: #{gconv_forward.2} parent=0 // pred_region
    _
  $region29: #{gconv_forward.2} parent=0 // pred_fallthru
    _

</llo_original>
